<compile_context>
chip_gen: v7x
topology: tpu7x:2x2x1
jax: 0.10.0
libtpu: 0.0.40
codegen_flags: <defaults>
</compile_context>

<pallas_src>
import jax
import jax.numpy as jnp
from jax.experimental import pallas as pl
from jax.experimental.pallas import tpu as pltpu

_LANE = 128


def _h_swish_kernel(x_ref, o_ref):
    x = x_ref[...]
    # h_sigmoid(x) = clamp(x + 3, 0, 6) / 6 ; h_swish(x) = x * h_sigmoid(x).
    hs = jnp.clip(x + 3.0, 0.0, 6.0) * (1.0 / 6.0)
    o_ref[...] = (x * hs).astype(o_ref.dtype)


def _jnp_h_swish(x: jax.Array) -> jax.Array:
    """Single fused XLA elementwise pass (used only for awkward sizes)."""
    return (x * (jnp.clip(x + 3.0, 0.0, 6.0) * (1.0 / 6.0))).astype(x.dtype)


def _select_tiling():
    """Generation-aware (target_block_bytes, vmem_limit_bytes)."""
    # v5e / v6e default: 4 MiB blocks -> 2 bufs x (in + out) = 16 MiB, well under
    # a 24 MiB scoped limit (128 MiB physical VMEM on both chips).
    block_bytes = 4 * 1024 * 1024
    vmem_limit = 24 << 20
    try:
        info = pltpu.get_tpu_info()
        vmem = getattr(info, "vmem_capacity_bytes", None)
        if vmem is not None and vmem <= 80 * 1024 * 1024:
            # v7x-class TensorCore: 64 MiB VMEM, ~3.2 TB/s HBM. Bigger blocks cut
            # the per-grid-step overhead to <10%; 2 x (in + out) x 8 MiB = 32 MiB
            # fits under a raised 40 MiB scoped limit (64 MiB physical).
            block_bytes = 8 * 1024 * 1024
            vmem_limit = 40 << 20
    except Exception:
        pass  # non-TPU / interpret / query failure: keep the safe defaults
    return block_bytes, vmem_limit


def _h_swish_slab(slab: jax.Array, block_bytes: int, vmem_limit: int,
                  sub_mult: int) -> jax.Array:
    """Run the kernel over a (rows, lanes) slab; lanes is a multiple of 128."""
    rows, lanes = slab.shape
    itemsize = jnp.dtype(slab.dtype).itemsize

    # Rows per block so one block is ~block_bytes, rounded down to the
    # dtype-aware sublane multiple (8 for f32, 16 for bf16, 32 for int8/fp8).
    target_tr = max(sub_mult,
                    (block_bytes // (lanes * itemsize)) // sub_mult * sub_mult)

    if rows > target_tr:
        tr = target_tr
    elif rows >= 2 * sub_mult:
        # Mid-size input: force >= 2 grid blocks so both v7x TensorCores get
        # work (on single-TC v5e/v6e this only adds one ~0.35 us grid step).
        half = pl.cdiv(rows, 2)
        tr = ((half + sub_mult - 1) // sub_mult) * sub_mult
    else:
        # Tiny input: one block whose dims equal the full array dims, which is
        # always a legal TPU block shape (no (8,128) divisor search needed).
        tr = rows

    grid = (pl.cdiv(rows, tr),)

    # NOTE: when tr does not divide rows, the last grid block loads padded /
    # out-of-bounds rows, computes h_swish on that garbage, and Pallas masks it
    # out on store. This is intentional and correct -- do not "fix" it.
    return pl.pallas_call(
        _h_swish_kernel,
        out_shape=jax.ShapeDtypeStruct((rows, lanes), slab.dtype),
        grid_spec=pltpu.PrefetchScalarGridSpec(
            num_scalar_prefetch=0,
            grid=grid,
            in_specs=[pl.BlockSpec((tr, lanes), lambda i: (i, 0))],
            out_specs=pl.BlockSpec((tr, lanes), lambda i: (i, 0)),
        ),
        compiler_params=pltpu.CompilerParams(
            dimension_semantics=("parallel",),
            vmem_limit_bytes=vmem_limit,
        ),
        cost_estimate=pl.CostEstimate(
            flops=5 * rows * lanes,
            transcendentals=0,
            bytes_accessed=2 * rows * lanes * itemsize,
        ),
        # TODO(synk): if callers donate x (jit donate_argnums), also pass
        # input_output_aliases={0: 0} so the output reuses the input HBM buffer.
    )(slab)


def h_swish(x: jax.Array) -> jax.Array:
    """Applies h_swish elementwise. x: NCHW (any shape / floating dtype)."""
    orig_shape = x.shape
    n = x.size
    if n == 0:
        return x

    if n % _LANE != 0:
        # Awkward length: a single fused XLA elementwise pass is already exactly
        # one HBM read + one write (the roofline optimum for this op), strictly
        # better than a kernel on the aligned prefix plus a full-size
        # concatenate for the <128-element tail (two HBM passes).
        return _jnp_h_swish(x)

    itemsize = jnp.dtype(x.dtype).itemsize
    sub_mult = max(8, 32 // max(itemsize, 1))  # 8 (f32), 16 (bf16), 32 (int8/fp8)

    # Zero-copy fast path: reshape (free for contiguous data) to a lane-dense
    # 2-D slab, run the kernel, reshape back. No padding, no trailing slice.
    lanes = _LANE
    for cand in (1024, 512, 256):
        if n % cand == 0:
            lanes = cand
            break

    block_bytes, vmem_limit = _select_tiling()
    out = _h_swish_slab(x.reshape(n // lanes, lanes), block_bytes, vmem_limit,
                        sub_mult)
    return out.reshape(orig_shape)


def h_swish_ref(x: jax.Array) -> jax.Array:
    return x * (jnp.clip(x + 3.0, 0.0, 6.0) / 6.0)


if __name__ == "__main__":
    key = jax.random.PRNGKey(0)

    # Main case: NCHW input matching the module spec (single-block path).
    x = jax.random.normal(key, (2, 4, 16, 16), dtype=jnp.float32) * 4.0
    y = jax.block_until_ready(h_swish(x))
    assert y.shape == x.shape and y.dtype == x.dtype
    assert jnp.allclose(y, h_swish_ref(x), atol=1e-6, rtol=1e-6)

    # Medium case: exercises the multi-block grid (>=2 blocks / both v7x TCs).
    k1 = jax.random.PRNGKey(1)
    x1 = jax.random.normal(k1, (2, 16, 32, 32), dtype=jnp.float32) * 4.0
    y1 = jax.block_until_ready(h_swish(x1))
    assert y1.shape == x1.shape and y1.dtype == x1.dtype
    assert jnp.allclose(y1, h_swish_ref(x1), atol=1e-6, rtol=1e-6)

    # Awkward-size path (n not a multiple of 128): single fused jnp pass.
    k2 = jax.random.PRNGKey(2)
    x2 = jax.random.normal(k2, (3, 5, 7, 11), dtype=jnp.float32) * 4.0
    y2 = jax.block_until_ready(h_swish(x2))
    assert y2.shape == x2.shape and y2.dtype == x2.dtype
    assert jnp.allclose(y2, h_swish_ref(x2), atol=1e-6, rtol=1e-6)

    # bf16 path (dtype-aware sublane multiple).
    x3 = x1.astype(jnp.bfloat16)
    y3 = jax.block_until_ready(h_swish(x3))
    assert y3.shape == x3.shape and y3.dtype == x3.dtype
    assert jnp.allclose(y3.astype(jnp.float32),
                        h_swish_ref(x3).astype(jnp.float32), atol=3e-2, rtol=3e-2)

    print("KERNEL_OK")
</pallas_src>

<mosaic_0001>
module attributes {stable_mosaic.version = 11 : i64} {
  func.func @_h_swish_kernel(%arg0: i32, %arg1: memref<2x1024xf32, #tpu.memory_space<vmem>>, %arg2: memref<2x1024xf32, #tpu.memory_space<vmem>>) attributes {dimension_semantics = [#tpu.dimension_semantics<parallel>], iteration_bounds = array<i64: 1>, scalar_prefetch = 0 : i64, scratch_operands = 0 : i64, tpu.core_type = #tpu.core_type<tc>, window_params = [{transform_indices = @transform_0, window_bounds = array<i64: 2, 1024>}, {transform_indices = @transform_1, window_bounds = array<i64: 2, 1024>}]} {
    %c0 = arith.constant 0 : index
    %c0_0 = arith.constant 0 : index
    %0 = vector.load %arg1[%c0, %c0_0] : memref<2x1024xf32, #tpu.memory_space<vmem>>, vector<2x1024xf32>
    %cst = arith.constant 3.000000e+00 : f32
    %1 = vector.broadcast %cst : f32 to vector<2x1024xf32>
    %2 = arith.addf %0, %1 : vector<2x1024xf32>
    %cst_1 = arith.constant 0.000000e+00 : f32
    %cst_2 = arith.constant 6.000000e+00 : f32
    %3 = vector.broadcast %cst_1 : f32 to vector<2x1024xf32>
    %4 = arith.maximumf %3, %2 : vector<2x1024xf32>
    %5 = vector.broadcast %cst_2 : f32 to vector<2x1024xf32>
    %6 = arith.minimumf %5, %4 : vector<2x1024xf32>
    %cst_3 = arith.constant 0.166666672 : f32
    %7 = vector.broadcast %cst_3 : f32 to vector<2x1024xf32>
    %8 = arith.mulf %6, %7 : vector<2x1024xf32>
    %9 = arith.mulf %0, %8 : vector<2x1024xf32>
    %c0_4 = arith.constant 0 : index
    %c0_5 = arith.constant 0 : index
    %10 = vector.load %arg2[%c0_4, %c0_5] : memref<2x1024xf32, #tpu.memory_space<vmem>>, vector<2x1024xf32>
    tpu.vector_store %arg2[%c0_4, %c0_5], %9 {strides = array<i32>} : memref<2x1024xf32, #tpu.memory_space<vmem>>, vector<2x1024xf32>,
    return
  }
  func.func @transform_0(%arg0: i32) -> (i32, i32) {
    %c0_i32 = arith.constant 0 : i32
    %c0_i32_0 = arith.constant 0 : i32
    return %arg0, %c0_i32 : i32, i32
  }
  func.func @transform_1(%arg0: i32) -> (i32, i32) {
    %c0_i32 = arith.constant 0 : i32
    %c0_i32_0 = arith.constant 0 : i32
    return %arg0, %c0_i32 : i32, i32
  }
}

</mosaic_0001>

<llo_original>
// kernel: tpu_custom_call.1
$region0: #{tpu_custom_call.1}
  #allocation0 [shape = 'u32[]', space=smem, size = 0x4, offset = 0x4, fixed_abs, tag = 'smem constant byte address 0x4 - core index']
  #allocation1 [shape = 'u32[144,128]{1,0:T(1,128)}', space=vmem, size = 0x12000, scoped, tag = 'internal scratch']
  %s0 = inlined_call_operand.hbm [shape: f32[2,1024], index: 0, kind: input, shape index: {}]
  %s1 = inlined_call_operand.hbm [shape: f32[2,1024], index: 1, kind: output, shape index: {}]
  %s2 = sld [smem:[#allocation0]]
  $region18: #{tpu_custom_call.1} parent=0
    _
  %s4 = ssub.s32 1, %s2
  %s5 = scalar_select 0, %s4, %s2
  $region1: #{tpu_custom_call.1} parent=0
    #allocation2 [shape = 'u8[8192]{0}', space=vmem, size = 0x2000, scoped, tag = 'input window, operand 0, single buffered']
    #allocation3 [shape = 's32[1]{0}', space=sflag, size = 0x4, scoped, tag = 'scoped memory for tpu_custom_call.1']
    #allocation4 [shape = 's32[1]{0}', space=sflag, size = 0x4, scoped, tag = 'scoped memory for tpu_custom_call.1']
    #allocation5 [shape = 'u8[8192]{0}', space=vmem, size = 0x2000, scoped, tag = 'output window, operand 0, single buffered']
    %6 = vsyncpa [#allocation3], 0
    %7 = vsyncpa [#allocation4], 0
    // Predicated region
    $region2: #{tpu_custom_call.1} parent=1 // pred_check
      _
    $region3: #{tpu_custom_call.1} parent=1 // pred_check_branch
      %9 = sbr.rel (0) target = $region5
    $region4: #{tpu_custom_call.1} parent=1 // pred_region
      %s11 = ssub.s32 256, 256
      %12 = vsyncadd [#allocation3], %s11
      %s14 = sshll.u32 [#allocation2], 4
      %s15 = int_to_ptr.vmem [resolvable:$true] %s14
      %17 = dma.hbm_to_vmem [thread:$0]  %s0, 256, %s15, [#allocation3]
    $region5: #{tpu_custom_call.1} parent=1 // pred_fallthru
      _
    // Predicated region
    $region6: #{tpu_custom_call.1} parent=1 // pred_check
      _
    $region7: #{tpu_custom_call.1} parent=1 // pred_check_branch
      %19 = sbr.rel (0) target = $region9
    $region8: #{tpu_custom_call.1} parent=1 // pred_region
      %20 = dma.done [#allocation3], 256
    $region9: #{tpu_custom_call.1} parent=1 // pred_fallthru
      _
    %v21 = vld [vmem:[#allocation2] sm:$0xff]
    %v22 = vld [vmem:[#allocation2 + $0x8] sm:$0xff]
    %v23 = vadd.f32 %v21, 3.0
    %v24 = vadd.f32 %v22, 3.0
    %v25 = vmax.f32 %v23, 0.0
    %v26 = vmax.f32 %v24, 0.0
    %v27 = vmin.f32 %v25, 6.0
    %v28 = vmin.f32 %v26, 6.0
    %v29 = vmul.f32 %v27, 0.16666667
    %v30 = vmul.f32 %v28, 0.16666667
    %v31 = vmul.f32 %v21, %v29
    %v32 = vmul.f32 %v22, %v30
    %33 = vst [vmem:[#allocation5] sm:$0xff] %v31
    %34 = vst [vmem:[#allocation5 + $0x8] sm:$0xff] %v32
    // Predicated region
    $region10: #{tpu_custom_call.1} parent=1 // pred_check
      _
    $region11: #{tpu_custom_call.1} parent=1 // pred_check_branch
      %36 = sbr.rel (0) target = $region13
    $region12: #{tpu_custom_call.1} parent=1 // pred_region
      %s38 = ssub.s32 256, 256
      %39 = vsyncadd [#allocation4], %s38
      %s41 = sshll.u32 [#allocation5], 4
      %s42 = int_to_ptr.vmem [resolvable:$true] %s41
      %44 = dma.vmem_to_hbm [thread:$0]  %s42, 256, %s1, [#allocation4]
    $region13: #{tpu_custom_call.1} parent=1 // pred_fallthru
      _
    // Predicated region
    $region14: #{tpu_custom_call.1} parent=1 // pred_check
      _
    $region15: #{tpu_custom_call.1} parent=1 // pred_check_branch
      %46 = sbr.rel (0) target = $region17
    $region16: #{tpu_custom_call.1} parent=1 // pred_region
      %47 = dma.done [#allocation4], 256
    $region17: #{tpu_custom_call.1} parent=1 // pred_fallthru
      _
    %48 = vsyncpa [#allocation3], 1
    %49 = vsyncpa [#allocation4], 1

</llo_original>
